<compile_context>
chip_gen: v5e
topology: v5e:2x2
jax: 0.10.0
libtpu: 0.0.40
codegen_flags: <defaults>
</compile_context>

<pallas_src>
import functools
import math

import jax
import jax.numpy as jnp
import numpy as np
from jax.experimental import pallas as pl
from jax.experimental.pallas import tpu as pltpu

SCORE_THRESH = 0.05
BOX_CODER_WEIGHTS = (10.0, 10.0, 5.0, 5.0)
BBOX_XFORM_CLIP = math.log(1000.0 / 16.0)
LANE = 128
TILE_CANDIDATES = (1024, 512, 256, 128)
PER_STEP_VMEM_BUDGET = 12 * 1024 * 1024   # conservative (v5e default scoped VMEM is 16 MiB)


def _round_up(x, m):
    return ((x + m - 1) // m) * m


def _pick_tile(n_total, num_classes):
    """Largest lane tile with bounded padding waste and bounded VMEM footprint."""
    npad = _round_up(max(n_total, 1), LANE)
    # bytes per proposal column across all double-buffered in/out blocks:
    #   logits 4C + deltas 16C + geom 24 + prob 4C + keep C + boxes 16C
    bytes_per_col = 41 * num_classes + 24
    max_tn_vmem = max(LANE, PER_STEP_VMEM_BUDGET // (2 * bytes_per_col))
    for cand in TILE_CANDIDATES:
        if cand > max_tn_vmem:
            continue
        total = _round_up(npad, cand)
        if total - npad <= max(npad // 4, 0):
            return cand, total
    return LANE, npad


def _postprocess_kernel(logits_ref, deltas_ref, geom_ref,
                        prob_ref, keep_ref, boxes_ref,
                        *, score_thresh, inv_weights):
    # Layout: class axis on sublanes (axis 0), proposal axis on lanes (last axis, lane-dense).

    # ---- softmax over the class axis ----
    logits = logits_ref[...]                               # (C, TN)
    m = jnp.max(logits, axis=0, keepdims=True)             # (1, TN)
    e = jnp.exp(logits - m)
    denom = jnp.sum(e, axis=0, keepdims=True)              # (1, TN)
    inv = pl.reciprocal(denom, approx=False)               # one (1, TN) reciprocal
    prob = e * inv                                         # broadcast mult, no (C, TN) divide
    prob_ref[...] = prob

    # ---- dense score-threshold mask (inds_all = scores > score_thresh) ----
    keep_ref[...] = (prob > score_thresh).astype(jnp.int8)

    # ---- per-proposal geometry (each row is (1, TN), broadcast over classes) ----
    x1 = geom_ref[0:1, :]
    y1 = geom_ref[1:2, :]
    x2 = geom_ref[2:3, :]
    y2 = geom_ref[3:4, :]
    wm1 = geom_ref[4:5, :]     # img_w - 1 for this proposal's image
    hm1 = geom_ref[5:6, :]     # img_h - 1 for this proposal's image

    TO_REMOVE = 1.0
    widths = x2 - x1 + TO_REMOVE
    heights = y2 - y1 + TO_REMOVE
    ctr_x = x1 + 0.5 * widths
    ctr_y = y1 + 0.5 * heights

    # ---- BoxCoder.decode (weights as reciprocal multiplies) ----
    iwx, iwy, iww, iwh = inv_weights
    dx = deltas_ref[0, :, :] * iwx                         # (C, TN)
    dy = deltas_ref[1, :, :] * iwy
    dw = jnp.minimum(deltas_ref[2, :, :] * iww, BBOX_XFORM_CLIP)
    dh = jnp.minimum(deltas_ref[3, :, :] * iwh, BBOX_XFORM_CLIP)

    pred_ctr_x = dx * widths + ctr_x
    pred_ctr_y = dy * heights + ctr_y
    half_w = 0.5 * jnp.exp(dw) * widths
    half_h = 0.5 * jnp.exp(dh) * heights

    # ---- clip_to_image(remove_empty=False), per-proposal image bounds ----
    boxes_ref[0, :, :] = jnp.clip(pred_ctr_x - half_w, 0.0, wm1)
    boxes_ref[1, :, :] = jnp.clip(pred_ctr_y - half_h, 0.0, hm1)
    boxes_ref[2, :, :] = jnp.clip(pred_ctr_x + half_w - 1.0, 0.0, wm1)
    boxes_ref[3, :, :] = jnp.clip(pred_ctr_y + half_h - 1.0, 0.0, hm1)


def _dense_postprocess(class_logits, box_regression, concat_boxes, wm1, hm1):
    """All dense math + layout plumbing; shapes are static so this jits cleanly."""
    n_total, c = class_logits.shape
    tn, total = _pick_tile(n_total, c)
    pad = total - n_total

    # ---- layout plumbing: proposal axis -> lanes (last dim) ----
    logits_t = class_logits.T                                            # (C, N)
    deltas_t = box_regression.reshape(n_total, c, 4).transpose(2, 1, 0)  # (4, C, N)
    geom = jnp.concatenate(
        [concat_boxes.T, wm1[None, :], hm1[None, :]], axis=0)           # (6, N)

    if pad:
        logits_t = jnp.pad(logits_t, ((0, 0), (0, pad)))
        deltas_t = jnp.pad(deltas_t, ((0, 0), (0, 0), (0, pad)))
        geom = jnp.pad(geom, ((0, 0), (0, pad)))
        # padded columns are self-contained (softmax per column); outputs there are sliced off.

    kernel = functools.partial(
        _postprocess_kernel,
        score_thresh=SCORE_THRESH,
        inv_weights=tuple(1.0 / w for w in BOX_CODER_WEIGHTS),
    )

    grid = (total // tn,)
    prob_t, keep_t, boxes_t = pl.pallas_call(
        kernel,
        grid=grid,
        in_specs=[
            pl.BlockSpec((c, tn), lambda i: (0, i)),          # logits (C, N)
            pl.BlockSpec((4, c, tn), lambda i: (0, 0, i)),    # stacked deltas (4, C, N)
            pl.BlockSpec((6, tn), lambda i: (0, i)),          # proposal geometry (6, N)
        ],
        out_specs=[
            pl.BlockSpec((c, tn), lambda i: (0, i)),          # prob
            pl.BlockSpec((c, tn), lambda i: (0, i)),          # keep (int8)
            pl.BlockSpec((4, c, tn), lambda i: (0, 0, i)),    # stacked clipped boxes
        ],
        out_shape=[
            jax.ShapeDtypeStruct((c, total), jnp.float32),
            jax.ShapeDtypeStruct((c, total), jnp.int8),
            jax.ShapeDtypeStruct((4, c, total), jnp.float32),
        ],
        compiler_params=pltpu.CompilerParams(
            dimension_semantics=("parallel",)),
    )(logits_t, deltas_t, geom)

    # ---- back to PyTorch conventions ----
    prob = prob_t[:, :n_total].T                                         # (N, C)
    keep = keep_t[:, :n_total].T                                         # (N, C) int8
    # boxes[i, 4j:4j+4] = (x1, y1, x2, y2) for class j
    boxes = boxes_t[:, :, :n_total].transpose(2, 1, 0).reshape(n_total, 4 * c)
    return prob, boxes, keep


_dense_postprocess_jit = jax.jit(_dense_postprocess)


def postprocess_forward(class_logits, box_regression, boxes_per_image,
                        proposal_boxes_list, image_sizes):
    """Batched PostProcessor dense compute (whole batch in one jitted dispatch).

    class_logits:        (N_total, C) f32   (all images concatenated, like the PyTorch module)
    box_regression:      (N_total, 4*C) f32, interleaved (tx, ty, tw, th) per class
    boxes_per_image:     list[int]
    proposal_boxes_list: list of (n_i, 4) f32 xyxy
    image_sizes:         list of (width, height) python ints
    Returns a list (one per image) of
       (class_prob (n_i, C) f32, boxes (n_i, 4*C) f32 decoded+clipped, keep (n_i, C) int8).
    """
    n_total, _c = class_logits.shape
    assert sum(boxes_per_image) == n_total

    concat_boxes = jnp.concatenate(proposal_boxes_list, axis=0)          # (N, 4)
    counts = np.asarray(boxes_per_image)
    wm1 = jnp.asarray(np.repeat(
        np.asarray([float(w) - 1.0 for (w, _h) in image_sizes], dtype=np.float32), counts))
    hm1 = jnp.asarray(np.repeat(
        np.asarray([float(h) - 1.0 for (_w, h) in image_sizes], dtype=np.float32), counts))

    prob, boxes, keep = _dense_postprocess_jit(
        class_logits, box_regression, concat_boxes, wm1, hm1)

    results = []
    start = 0
    for npi in boxes_per_image:
        results.append((prob[start:start + npi],
                        boxes[start:start + npi],
                        keep[start:start + npi]))
        start += npi
    return results


def _reference_one_image(class_logits, box_regression, proposal_boxes, image_size):
    """Pure-JAX reference of the same dense math (PyTorch semantics)."""
    n, c = class_logits.shape
    img_w, img_h = image_size
    prob = jax.nn.softmax(class_logits, axis=-1)
    keep = (prob > SCORE_THRESH)

    x1, y1, x2, y2 = (proposal_boxes[:, k:k + 1] for k in range(4))
    widths = x2 - x1 + 1.0
    heights = y2 - y1 + 1.0
    ctr_x = x1 + 0.5 * widths
    ctr_y = y1 + 0.5 * heights
    wx, wy, ww, wh = BOX_CODER_WEIGHTS
    reg = box_regression.reshape(n, c, 4)
    dx = reg[..., 0] / wx
    dy = reg[..., 1] / wy
    dw = jnp.minimum(reg[..., 2] / ww, BBOX_XFORM_CLIP)
    dh = jnp.minimum(reg[..., 3] / wh, BBOX_XFORM_CLIP)
    pcx = dx * widths + ctr_x
    pcy = dy * heights + ctr_y
    pw = jnp.exp(dw) * widths
    ph = jnp.exp(dh) * heights
    bx1 = jnp.clip(pcx - 0.5 * pw, 0.0, img_w - 1.0)
    by1 = jnp.clip(pcy - 0.5 * ph, 0.0, img_h - 1.0)
    bx2 = jnp.clip(pcx + 0.5 * pw - 1.0, 0.0, img_w - 1.0)
    by2 = jnp.clip(pcy + 0.5 * ph - 1.0, 0.0, img_h - 1.0)
    boxes = jnp.stack([bx1, by1, bx2, by2], axis=-1).reshape(n, 4 * c)
    return prob, boxes, keep


def _make_inputs(key, num_classes, boxes_per_image, image_sizes):
    n_total = sum(boxes_per_image)
    k1, k2, k3, k4 = jax.random.split(key, 4)
    class_logits = jax.random.normal(k1, (n_total, num_classes), dtype=jnp.float32)
    box_regression = 0.5 * jax.random.normal(
        k2, (n_total, 4 * num_classes), dtype=jnp.float32)

    proposal_boxes_list = []
    start = 0
    for npi, (w, h) in zip(boxes_per_image, image_sizes):
        kk = jax.random.fold_in(k3, start)
        xy = jax.random.uniform(kk, (npi, 2), dtype=jnp.float32) * jnp.array(
            [w * 0.6, h * 0.6], dtype=jnp.float32)
        wh = 4.0 + jax.random.uniform(
            jax.random.fold_in(k4, start), (npi, 2), dtype=jnp.float32
        ) * jnp.array([w * 0.3, h * 0.3], dtype=jnp.float32)
        props = jnp.concatenate([xy, xy + wh], axis=-1)  # x1, y1, x2, y2
        proposal_boxes_list.append(props)
        start += npi
    return class_logits, box_regression, proposal_boxes_list


def _check(class_logits, box_regression, boxes_per_image, proposal_boxes_list, image_sizes):
    results = postprocess_forward(class_logits, box_regression, boxes_per_image,
                                  proposal_boxes_list, image_sizes)
    for r in results:
        jax.block_until_ready(r)

    start = 0
    for (prob, boxes, keep), npi, props, size in zip(
            results, boxes_per_image, proposal_boxes_list, image_sizes):
        prob_r, boxes_r, keep_r = _reference_one_image(
            class_logits[start:start + npi],
            box_regression[start:start + npi], props, size)
        start += npi
        np.testing.assert_allclose(np.asarray(prob), np.asarray(prob_r),
                                   rtol=1e-5, atol=1e-5)
        np.testing.assert_allclose(np.asarray(boxes), np.asarray(boxes_r),
                                   rtol=1e-4, atol=1e-3)
        np.testing.assert_array_equal(np.asarray(keep).astype(bool),
                                      np.asarray(keep_r))


if __name__ == "__main__":
    key = jax.random.PRNGKey(0)

    # Case 1: tiny shapes (single 128-lane tile).
    num_classes = 8            # includes background class 0
    boxes_per_image = [8, 8]   # proposals per image
    image_sizes = [(64, 48), (80, 60)]  # (width, height)
    cl, br, props = _make_inputs(key, num_classes, boxes_per_image, image_sizes)
    _check(cl, br, boxes_per_image, props, image_sizes)

    # Case 2: COCO-like class count and a non-tile-aligned N (exercises tiling + padding).
    num_classes2 = 81
    boxes_per_image2 = [300, 340]
    image_sizes2 = [(320, 240), (256, 192)]
    cl2, br2, props2 = _make_inputs(jax.random.fold_in(key, 1),
                                    num_classes2, boxes_per_image2, image_sizes2)
    _check(cl2, br2, boxes_per_image2, props2, image_sizes2)

    print("KERNEL_OK")
</pallas_src>

<mosaic_0001>
module attributes {stable_mosaic.version = 11 : i64} {
  func.func @_postprocess_kernel(%arg0: i32, %arg1: memref<8x128xf32, #tpu.memory_space<vmem>>, %arg2: memref<4x8x128xf32, #tpu.memory_space<vmem>>, %arg3: memref<6x128xf32, #tpu.memory_space<vmem>>, %arg4: memref<8x128xf32, #tpu.memory_space<vmem>>, %arg5: memref<8x128xi8, #tpu.memory_space<vmem>>, %arg6: memref<4x8x128xf32, #tpu.memory_space<vmem>>) attributes {dimension_semantics = [#tpu.dimension_semantics<parallel>], iteration_bounds = array<i64: 1>, scalar_prefetch = 0 : i64, scratch_operands = 0 : i64, tpu.core_type = #tpu.core_type<tc>, window_params = [{transform_indices = @transform_0, window_bounds = array<i64: 8, 128>}, {transform_indices = @transform_1, window_bounds = array<i64: 4, 8, 128>}, {transform_indices = @transform_2, window_bounds = array<i64: 6, 128>}, {transform_indices = @transform_3, window_bounds = array<i64: 8, 128>}, {transform_indices = @transform_4, window_bounds = array<i64: 8, 128>}, {transform_indices = @transform_5, window_bounds = array<i64: 4, 8, 128>}]} {
    %c0 = arith.constant 0 : index
    %c0_0 = arith.constant 0 : index
    %0 = vector.load %arg1[%c0, %c0_0] : memref<8x128xf32, #tpu.memory_space<vmem>>, vector<8x128xf32>
    %cst = arith.constant dense<0xFF800000> : vector<128xf32>
    %1 = vector.multi_reduction <maximumf>, %0, %cst [0] : vector<8x128xf32> to vector<128xf32>
    %2 = vector.shape_cast %1 : vector<128xf32> to vector<1x128xf32>
    %3 = vector.broadcast %2 : vector<1x128xf32> to vector<8x128xf32>
    %4 = arith.subf %0, %3 : vector<8x128xf32>
    %5 = math.exp %4 : vector<8x128xf32>
    %cst_1 = arith.constant dense<0.000000e+00> : vector<128xf32>
    %6 = vector.multi_reduction <add>, %5, %cst_1 [0] : vector<8x128xf32> to vector<128xf32>
    %7 = vector.shape_cast %6 : vector<128xf32> to vector<1x128xf32>
    %8 = tpu.reciprocal %7 : vector<1x128xf32> -> vector<1x128xf32>
    %9 = vector.broadcast %8 : vector<1x128xf32> to vector<8x128xf32>
    %10 = arith.mulf %5, %9 : vector<8x128xf32>
    %c0_2 = arith.constant 0 : index
    %c0_3 = arith.constant 0 : index
    %11 = vector.load %arg4[%c0_2, %c0_3] : memref<8x128xf32, #tpu.memory_space<vmem>>, vector<8x128xf32>
    tpu.vector_store %arg4[%c0_2, %c0_3], %10 {strides = array<i32>} : memref<8x128xf32, #tpu.memory_space<vmem>>, vector<8x128xf32>,
    %cst_4 = arith.constant 5.000000e-02 : f32
    %12 = vector.broadcast %cst_4 : f32 to vector<8x128xf32>
    %13 = arith.cmpf ogt, %10, %12 : vector<8x128xf32>
    %14 = arith.extui %13 : vector<8x128xi1> to vector<8x128xi8>
    %c0_5 = arith.constant 0 : index
    %c0_6 = arith.constant 0 : index
    %15 = vector.load %arg5[%c0_5, %c0_6] : memref<8x128xi8, #tpu.memory_space<vmem>>, vector<8x128xi8>
    tpu.vector_store %arg5[%c0_5, %c0_6], %14 {strides = array<i32>} : memref<8x128xi8, #tpu.memory_space<vmem>>, vector<8x128xi8>,
    %c0_7 = arith.constant 0 : index
    %c0_8 = arith.constant 0 : index
    %16 = vector.load %arg3[%c0_7, %c0_8] : memref<6x128xf32, #tpu.memory_space<vmem>>, vector<1x128xf32>
    %c1 = arith.constant 1 : index
    %c0_9 = arith.constant 0 : index
    %17 = vector.load %arg3[%c1, %c0_9] : memref<6x128xf32, #tpu.memory_space<vmem>>, vector<1x128xf32>
    %c2 = arith.constant 2 : index
    %c0_10 = arith.constant 0 : index
    %18 = vector.load %arg3[%c2, %c0_10] : memref<6x128xf32, #tpu.memory_space<vmem>>, vector<1x128xf32>
    %c3 = arith.constant 3 : index
    %c0_11 = arith.constant 0 : index
    %19 = vector.load %arg3[%c3, %c0_11] : memref<6x128xf32, #tpu.memory_space<vmem>>, vector<1x128xf32>
    %c4 = arith.constant 4 : index
    %c0_12 = arith.constant 0 : index
    %20 = vector.load %arg3[%c4, %c0_12] : memref<6x128xf32, #tpu.memory_space<vmem>>, vector<1x128xf32>
    %c5 = arith.constant 5 : index
    %c0_13 = arith.constant 0 : index
    %21 = vector.load %arg3[%c5, %c0_13] : memref<6x128xf32, #tpu.memory_space<vmem>>, vector<1x128xf32>
    %22 = arith.subf %18, %16 : vector<1x128xf32>
    %cst_14 = arith.constant 1.000000e+00 : f32
    %23 = vector.broadcast %cst_14 : f32 to vector<1x128xf32>
    %24 = arith.addf %22, %23 : vector<1x128xf32>
    %25 = arith.subf %19, %17 : vector<1x128xf32>
    %cst_15 = arith.constant 1.000000e+00 : f32
    %26 = vector.broadcast %cst_15 : f32 to vector<1x128xf32>
    %27 = arith.addf %25, %26 : vector<1x128xf32>
    %cst_16 = arith.constant 5.000000e-01 : f32
    %28 = vector.broadcast %cst_16 : f32 to vector<1x128xf32>
    %29 = arith.mulf %28, %24 : vector<1x128xf32>
    %30 = arith.addf %16, %29 : vector<1x128xf32>
    %cst_17 = arith.constant 5.000000e-01 : f32
    %31 = vector.broadcast %cst_17 : f32 to vector<1x128xf32>
    %32 = arith.mulf %31, %27 : vector<1x128xf32>
    %33 = arith.addf %17, %32 : vector<1x128xf32>
    %c0_18 = arith.constant 0 : index
    %c0_19 = arith.constant 0 : index
    %c0_20 = arith.constant 0 : index
    %34 = vector.load %arg2[%c0_18, %c0_19, %c0_20] : memref<4x8x128xf32, #tpu.memory_space<vmem>>, vector<1x8x128xf32>
    %35 = vector.shape_cast %34 : vector<1x8x128xf32> to vector<8x128xf32>
    %cst_21 = arith.constant 1.000000e-01 : f32
    %36 = vector.broadcast %cst_21 : f32 to vector<8x128xf32>
    %37 = arith.mulf %35, %36 : vector<8x128xf32>
    %c1_22 = arith.constant 1 : index
    %c0_23 = arith.constant 0 : index
    %c0_24 = arith.constant 0 : index
    %38 = vector.load %arg2[%c1_22, %c0_23, %c0_24] : memref<4x8x128xf32, #tpu.memory_space<vmem>>, vector<1x8x128xf32>
    %39 = vector.shape_cast %38 : vector<1x8x128xf32> to vector<8x128xf32>
    %cst_25 = arith.constant 1.000000e-01 : f32
    %40 = vector.broadcast %cst_25 : f32 to vector<8x128xf32>
    %41 = arith.mulf %39, %40 : vector<8x128xf32>
    %c2_26 = arith.constant 2 : index
    %c0_27 = arith.constant 0 : index
    %c0_28 = arith.constant 0 : index
    %42 = vector.load %arg2[%c2_26, %c0_27, %c0_28] : memref<4x8x128xf32, #tpu.memory_space<vmem>>, vector<1x8x128xf32>
    %43 = vector.shape_cast %42 : vector<1x8x128xf32> to vector<8x128xf32>
    %cst_29 = arith.constant 2.000000e-01 : f32
    %44 = vector.broadcast %cst_29 : f32 to vector<8x128xf32>
    %45 = arith.mulf %43, %44 : vector<8x128xf32>
    %cst_30 = arith.constant 4.13516665 : f32
    %46 = vector.broadcast %cst_30 : f32 to vector<8x128xf32>
    %47 = arith.minimumf %45, %46 : vector<8x128xf32>
    %c3_31 = arith.constant 3 : index
    %c0_32 = arith.constant 0 : index
    %c0_33 = arith.constant 0 : index
    %48 = vector.load %arg2[%c3_31, %c0_32, %c0_33] : memref<4x8x128xf32, #tpu.memory_space<vmem>>, vector<1x8x128xf32>
    %49 = vector.shape_cast %48 : vector<1x8x128xf32> to vector<8x128xf32>
    %cst_34 = arith.constant 2.000000e-01 : f32
    %50 = vector.broadcast %cst_34 : f32 to vector<8x128xf32>
    %51 = arith.mulf %49, %50 : vector<8x128xf32>
    %cst_35 = arith.constant 4.13516665 : f32
    %52 = vector.broadcast %cst_35 : f32 to vector<8x128xf32>
    %53 = arith.minimumf %51, %52 : vector<8x128xf32>
    %54 = vector.broadcast %24 : vector<1x128xf32> to vector<8x128xf32>
    %55 = arith.mulf %37, %54 : vector<8x128xf32>
    %56 = vector.broadcast %30 : vector<1x128xf32> to vector<8x128xf32>
    %57 = arith.addf %55, %56 : vector<8x128xf32>
    %58 = vector.broadcast %27 : vector<1x128xf32> to vector<8x128xf32>
    %59 = arith.mulf %41, %58 : vector<8x128xf32>
    %60 = vector.broadcast %33 : vector<1x128xf32> to vector<8x128xf32>
    %61 = arith.addf %59, %60 : vector<8x128xf32>
    %62 = math.exp %47 : vector<8x128xf32>
    %cst_36 = arith.constant 5.000000e-01 : f32
    %63 = vector.broadcast %cst_36 : f32 to vector<8x128xf32>
    %64 = arith.mulf %63, %62 : vector<8x128xf32>
    %65 = vector.broadcast %24 : vector<1x128xf32> to vector<8x128xf32>
    %66 = arith.mulf %64, %65 : vector<8x128xf32>
    %67 = math.exp %53 : vector<8x128xf32>
    %cst_37 = arith.constant 5.000000e-01 : f32
    %68 = vector.broadcast %cst_37 : f32 to vector<8x128xf32>
    %69 = arith.mulf %68, %67 : vector<8x128xf32>
    %70 = vector.broadcast %27 : vector<1x128xf32> to vector<8x128xf32>
    %71 = arith.mulf %69, %70 : vector<8x128xf32>
    %72 = arith.subf %57, %66 : vector<8x128xf32>
    %cst_38 = arith.constant 0.000000e+00 : f32
    %73 = vector.broadcast %cst_38 : f32 to vector<8x128xf32>
    %74 = arith.maximumf %73, %72 : vector<8x128xf32>
    %75 = vector.broadcast %20 : vector<1x128xf32> to vector<8x128xf32>
    %76 = arith.minimumf %75, %74 : vector<8x128xf32>
    %c0_39 = arith.constant 0 : index
    %c0_40 = arith.constant 0 : index
    %c0_41 = arith.constant 0 : index
    %77 = vector.load %arg6[%c0_39, %c0_40, %c0_41] : memref<4x8x128xf32, #tpu.memory_space<vmem>>, vector<1x8x128xf32>
    %78 = vector.shape_cast %77 : vector<1x8x128xf32> to vector<8x128xf32>
    %79 = vector.shape_cast %76 : vector<8x128xf32> to vector<1x8x128xf32>
    tpu.vector_store %arg6[%c0_39, %c0_40, %c0_41], %79 {strides = array<i32>} : memref<4x8x128xf32, #tpu.memory_space<vmem>>, vector<1x8x128xf32>,
    %80 = arith.subf %61, %71 : vector<8x128xf32>
    %cst_42 = arith.constant 0.000000e+00 : f32
    %81 = vector.broadcast %cst_42 : f32 to vector<8x128xf32>
    %82 = arith.maximumf %81, %80 : vector<8x128xf32>
    %83 = vector.broadcast %21 : vector<1x128xf32> to vector<8x128xf32>
    %84 = arith.minimumf %83, %82 : vector<8x128xf32>
    %c1_43 = arith.constant 1 : index
    %c0_44 = arith.constant 0 : index
    %c0_45 = arith.constant 0 : index
    %85 = vector.load %arg6[%c1_43, %c0_44, %c0_45] : memref<4x8x128xf32, #tpu.memory_space<vmem>>, vector<1x8x128xf32>
    %86 = vector.shape_cast %85 : vector<1x8x128xf32> to vector<8x128xf32>
    %87 = vector.shape_cast %84 : vector<8x128xf32> to vector<1x8x128xf32>
    tpu.vector_store %arg6[%c1_43, %c0_44, %c0_45], %87 {strides = array<i32>} : memref<4x8x128xf32, #tpu.memory_space<vmem>>, vector<1x8x128xf32>,
    %88 = arith.addf %57, %66 : vector<8x128xf32>
    %cst_46 = arith.constant 1.000000e+00 : f32
    %89 = vector.broadcast %cst_46 : f32 to vector<8x128xf32>
    %90 = arith.subf %88, %89 : vector<8x128xf32>
    %cst_47 = arith.constant 0.000000e+00 : f32
    %91 = vector.broadcast %cst_47 : f32 to vector<8x128xf32>
    %92 = arith.maximumf %91, %90 : vector<8x128xf32>
    %93 = vector.broadcast %20 : vector<1x128xf32> to vector<8x128xf32>
    %94 = arith.minimumf %93, %92 : vector<8x128xf32>
    %c2_48 = arith.constant 2 : index
    %c0_49 = arith.constant 0 : index
    %c0_50 = arith.constant 0 : index
    %95 = vector.load %arg6[%c2_48, %c0_49, %c0_50] : memref<4x8x128xf32, #tpu.memory_space<vmem>>, vector<1x8x128xf32>
    %96 = vector.shape_cast %95 : vector<1x8x128xf32> to vector<8x128xf32>
    %97 = vector.shape_cast %94 : vector<8x128xf32> to vector<1x8x128xf32>
    tpu.vector_store %arg6[%c2_48, %c0_49, %c0_50], %97 {strides = array<i32>} : memref<4x8x128xf32, #tpu.memory_space<vmem>>, vector<1x8x128xf32>,
    %98 = arith.addf %61, %71 : vector<8x128xf32>
    %cst_51 = arith.constant 1.000000e+00 : f32
    %99 = vector.broadcast %cst_51 : f32 to vector<8x128xf32>
    %100 = arith.subf %98, %99 : vector<8x128xf32>
    %cst_52 = arith.constant 0.000000e+00 : f32
    %101 = vector.broadcast %cst_52 : f32 to vector<8x128xf32>
    %102 = arith.maximumf %101, %100 : vector<8x128xf32>
    %103 = vector.broadcast %21 : vector<1x128xf32> to vector<8x128xf32>
    %104 = arith.minimumf %103, %102 : vector<8x128xf32>
    %c3_53 = arith.constant 3 : index
    %c0_54 = arith.constant 0 : index
    %c0_55 = arith.constant 0 : index
    %105 = vector.load %arg6[%c3_53, %c0_54, %c0_55] : memref<4x8x128xf32, #tpu.memory_space<vmem>>, vector<1x8x128xf32>
    %106 = vector.shape_cast %105 : vector<1x8x128xf32> to vector<8x128xf32>
    %107 = vector.shape_cast %104 : vector<8x128xf32> to vector<1x8x128xf32>
    tpu.vector_store %arg6[%c3_53, %c0_54, %c0_55], %107 {strides = array<i32>} : memref<4x8x128xf32, #tpu.memory_space<vmem>>, vector<1x8x128xf32>,
    return
  }
  func.func @transform_0(%arg0: i32) -> (i32, i32) {
    %c0_i32 = arith.constant 0 : i32
    %c0_i32_0 = arith.constant 0 : i32
    return %c0_i32, %arg0 : i32, i32
  }
  func.func @transform_1(%arg0: i32) -> (i32, i32, i32) {
    %c0_i32 = arith.constant 0 : i32
    %c0_i32_0 = arith.constant 0 : i32
    %c0_i32_1 = arith.constant 0 : i32
    return %c0_i32, %c0_i32_0, %arg0 : i32, i32, i32
  }
  func.func @transform_2(%arg0: i32) -> (i32, i32) {
    %c0_i32 = arith.constant 0 : i32
    %c0_i32_0 = arith.constant 0 : i32
    return %c0_i32, %arg0 : i32, i32
  }
  func.func @transform_3(%arg0: i32) -> (i32, i32) {
    %c0_i32 = arith.constant 0 : i32
    %c0_i32_0 = arith.constant 0 : i32
    return %c0_i32, %arg0 : i32, i32
  }
  func.func @transform_4(%arg0: i32) -> (i32, i32) {
    %c0_i32 = arith.constant 0 : i32
    %c0_i32_0 = arith.constant 0 : i32
    return %c0_i32, %arg0 : i32, i32
  }
  func.func @transform_5(%arg0: i32) -> (i32, i32, i32) {
    %c0_i32 = arith.constant 0 : i32
    %c0_i32_0 = arith.constant 0 : i32
    %c0_i32_1 = arith.constant 0 : i32
    return %c0_i32, %c0_i32_0, %arg0 : i32, i32, i32
  }
}

</mosaic_0001>

<llo_original>
// kernel: _dense_postprocess.1
$region0: #{_dense_postprocess.1}
  #allocation0 [shape = 'u32[]', space=smem, size = 0x4, offset = 0x4, fixed_abs, tag = 'smem constant byte address 0x4 - core index']
  #allocation1 [shape = 'u32[72,128]{1,0:T(1,128)}', space=vmem, size = 0x9000, scoped, tag = 'internal scratch']
  %s0 = inlined_call_operand.vmem [shape: f32[8,128], index: 0, kind: input, shape index: {}]
  %s1 = inlined_call_operand.vmem [shape: f32[4,8,128], index: 1, kind: input, shape index: {}]
  %s2 = inlined_call_operand.vmem [shape: f32[6,128], index: 2, kind: input, shape index: {}]
  %s3 = inlined_call_operand.vmem [shape: f32[8,128], index: 3, kind: output, shape index: {0}]
  %s4 = inlined_call_operand.vmem [shape: s8[8,128], index: 4, kind: output, shape index: {1}]
  %s5 = inlined_call_operand.vmem [shape: f32[4,8,128], index: 5, kind: output, shape index: {2}]
  %6 = xla_tuple %s3, %s4, %s5
  %s7 = sld [smem:[#allocation0]]
  $region38: #{_dense_postprocess.1} parent=0
    _
  %s9 = ssub.s32 1, %s7
  %s10 = scalar_select 0, %s9, %s7
  // Predicated region
  $region2: #{_dense_postprocess.1} parent=0 // pred_check
    _
  $region3: #{_dense_postprocess.1} parent=0 // pred_check_branch
    %12 = sbr.rel (0) target = $region5
  $region4: #{_dense_postprocess.1} parent=0 // pred_region
    _
  $region5: #{_dense_postprocess.1} parent=0 // pred_fallthru
    _
  // Predicated region
  $region6: #{_dense_postprocess.1} parent=0 // pred_check
    _
  $region7: #{_dense_postprocess.1} parent=0 // pred_check_branch
    %14 = sbr.rel (0) target = $region9
  $region8: #{_dense_postprocess.1} parent=0 // pred_region
    _
  $region9: #{_dense_postprocess.1} parent=0 // pred_fallthru
    _
  // Predicated region
  $region10: #{_dense_postprocess.1} parent=0 // pred_check
    _
  $region11: #{_dense_postprocess.1} parent=0 // pred_check_branch
    %16 = sbr.rel (0) target = $region13
  $region12: #{_dense_postprocess.1} parent=0 // pred_region
    _
  $region13: #{_dense_postprocess.1} parent=0 // pred_fallthru
    _
  %v19 = vld [vmem:[%s0] sm:$0xff]
  %v20 = vrot.slane %v19, 4
  %v21 = vmax.f32 %v19, %v20
  %v22 = vrot.slane %v21, 2
  %v23 = vmax.f32 %v21, %v22
  %v24 = vrot.slane %v23, 1
  %v25 = vmax.f32 %v23, %v24
  %v26 = vsub.f32 %v19, %v25
  %v27 = vmul.f32 %v26, 1.442695
  %v28 = vpow.pop %v27
  %v29 = vrot.slane %v28, 4
  %v30 = vadd.f32 %v28, %v29
  %v31 = vrot.slane %v30, 2
  %v32 = vadd.f32 %v30, %v31
  %v33 = vrot.slane %v32, 1
  %v34 = vadd.f32 %v32, %v33
  %v35 = vrcp.pop %v34
  %v36 = vmul.f32 %v34, %v35
  %v37 = vsub.f32 1.0, %v36
  %v38 = vmul.f32 %v35, %v37
  %v39 = vadd.f32 %v35, %v38
  %vm40 = vweird.f32 %v34
  %vm41 = vweird.f32 %v35
  %vm42 = vmor %vm40, %vm41
  %v43 = vsel %vm42, %v35, %v39
  %v44 = vand.u32 2147483647, %v34
  %vm45 = vcmp.eq.f32.partialorder %v44, 8.507059e+37
  %v46 = vand.u32 %v34, 2147483648
  %v47 = vor.u32 1.1754944e-38, %v46
  %v48 = vsel %vm45, %v47, %v43
  %v49 = vmul.f32 %v28, %v48
  %50 = vst [vmem:[%s3] sm:$0xff] %v49
  %vm51 = vcmp.gt.f32.partialorder %v49, 0.05
  %vm52 = vmpackc.low %vm51, %vm51
  %v53 = vsel %vm52, 16711935, 0
  %v54 = vsel %vm52, 16711935, 0
  %v55 = vpack.c.b8 %v54, %v53
  %vm56 = vnez %v55
  %v57 = vsel %vm56, 16843009, 0
  %58 = vst [vmem:[%s4] sm:$0x3] %v57
  %v59 = vld [vmem:[%s2] sm:$0x1]
  %v60 = vld [vmem:[%s2 + $0x1] sm:$0x1]
  %v61 = vld [vmem:[%s2 + $0x2] sm:$0x1]
  %v62 = vld [vmem:[%s2 + $0x3] sm:$0x1]
  %v63 = vld [vmem:[%s2 + $0x4] sm:$0x1]
  %v64 = vld [vmem:[%s2 + $0x5] sm:$0x1]
  %v65 = vsub.f32 %v61, %v59
  %v66 = vadd.f32 %v65, 1.0
  %v67 = vsub.f32 %v62, %v60
  %v68 = vadd.f32 %v67, 1.0
  %v69 = vmul.f32 %v66, 0.5
  %v70 = vadd.f32 %v59, %v69
  %v71 = vmul.f32 %v68, 0.5
  %v72 = vadd.f32 %v60, %v71
  %v73 = vld [vmem:[%s1] sm:$0xff]
  %v74 = vmul.f32 %v73, 0.1
  %s75 = scalar_lea.vmem %s1, 8
  %v76 = vld [vmem:[%s75] sm:$0xff]
  %v77 = vmul.f32 %v76, 0.1
  %s78 = scalar_lea.vmem %s1, 16
  %v79 = vld [vmem:[%s78] sm:$0xff]
  %v80 = vmul.f32 %v79, 0.2
  %v81 = vmin.f32 %v80, 4.1351666
  %s82 = scalar_lea.vmem %s1, 24
  %v83 = vld [vmem:[%s82] sm:$0xff]
  %v84 = vmul.f32 %v83, 0.2
  %v85 = vmin.f32 %v84, 4.1351666
  %v86 = vperm.slane %v66, 0
  %v87 = vmul.f32 %v74, %v86
  %v88 = vperm.slane %v70, 0
  %v89 = vadd.f32 %v87, %v88
  %v90 = vperm.slane %v68, 0
  %v91 = vmul.f32 %v77, %v90
  %v92 = vperm.slane %v72, 0
  %v93 = vadd.f32 %v91, %v92
  %v94 = vmul.f32 %v81, 1.442695
  %v95 = vpow.pop %v94
  %v96 = vmul.f32 %v95, 0.5
  %v97 = vmul.f32 %v96, %v86
  %v98 = vmul.f32 %v85, 1.442695
  %v99 = vpow.pop %v98
  %v100 = vmul.f32 %v99, 0.5
  %v101 = vmul.f32 %v100, %v90
  %v102 = vsub.f32 %v89, %v97
  %v103 = vmax.f32 %v102, 0.0
  %v104 = vperm.slane %v63, 0
  %v105 = vmin.f32 %v104, %v103
  %106 = vst [vmem:[%s5] sm:$0xff] %v105
  %v107 = vsub.f32 %v93, %v101
  %v108 = vmax.f32 %v107, 0.0
  %v109 = vperm.slane %v64, 0
  %v110 = vmin.f32 %v109, %v108
  %s111 = scalar_lea.vmem %s5, 8
  %112 = vst [vmem:[%s111] sm:$0xff] %v110
  %v113 = vadd.f32 %v89, %v97
  %v114 = vsub.f32 %v113, 1.0
  %v115 = vmax.f32 %v114, 0.0
  %v116 = vmin.f32 %v104, %v115
  %s117 = scalar_lea.vmem %s5, 16
  %118 = vst [vmem:[%s117] sm:$0xff] %v116
  %v119 = vadd.f32 %v93, %v101
  %v120 = vsub.f32 %v119, 1.0
  %v121 = vmax.f32 %v120, 0.0
  %v122 = vmin.f32 %v109, %v121
  %s123 = scalar_lea.vmem %s5, 24
  %124 = vst [vmem:[%s123] sm:$0xff] %v122
  // Predicated region
  $region14: #{_dense_postprocess.1} parent=0 // pred_check
    _
  $region15: #{_dense_postprocess.1} parent=0 // pred_check_branch
    %126 = sbr.rel (0) target = $region17
  $region16: #{_dense_postprocess.1} parent=0 // pred_region
    _
  $region17: #{_dense_postprocess.1} parent=0 // pred_fallthru
    _
  // Predicated region
  $region18: #{_dense_postprocess.1} parent=0 // pred_check
    _
  $region19: #{_dense_postprocess.1} parent=0 // pred_check_branch
    %128 = sbr.rel (0) target = $region21
  $region20: #{_dense_postprocess.1} parent=0 // pred_region
    _
  $region21: #{_dense_postprocess.1} parent=0 // pred_fallthru
    _
  // Predicated region
  $region22: #{_dense_postprocess.1} parent=0 // pred_check
    _
  $region23: #{_dense_postprocess.1} parent=0 // pred_check_branch
    %130 = sbr.rel (0) target = $region25
  $region24: #{_dense_postprocess.1} parent=0 // pred_region
    _
  $region25: #{_dense_postprocess.1} parent=0 // pred_fallthru
    _
  // Predicated region
  $region26: #{_dense_postprocess.1} parent=0 // pred_check
    _
  $region27: #{_dense_postprocess.1} parent=0 // pred_check_branch
    %132 = sbr.rel (0) target = $region29
  $region28: #{_dense_postprocess.1} parent=0 // pred_region
    _
  $region29: #{_dense_postprocess.1} parent=0 // pred_fallthru
    _
  // Predicated region
  $region30: #{_dense_postprocess.1} parent=0 // pred_check
    _
  $region31: #{_dense_postprocess.1} parent=0 // pred_check_branch
    %134 = sbr.rel (0) target = $region33
  $region32: #{_dense_postprocess.1} parent=0 // pred_region
    _
  $region33: #{_dense_postprocess.1} parent=0 // pred_fallthru
    _
  // Predicated region
  $region34: #{_dense_postprocess.1} parent=0 // pred_check
    _
  $region35: #{_dense_postprocess.1} parent=0 // pred_check_branch
    %136 = sbr.rel (0) target = $region37
  $region36: #{_dense_postprocess.1} parent=0 // pred_region
    _
  $region37: #{_dense_postprocess.1} parent=0 // pred_fallthru
    _

</llo_original>
